<compile_context>
chip_gen: v6e
topology: v6e:2x2x1
jax: 0.10.0
libtpu: 0.0.40
codegen_flags: <defaults>
</compile_context>

<pallas_src>
import jax
import jax.numpy as jnp
from jax.experimental import pallas as pl
from jax.experimental.pallas import tpu as pltpu

_MIB = 1024 * 1024


def _round_up(n, m):
    return ((n + m - 1) // m) * m


def _pad2(a, rows, cols):
    pr, pc = rows - a.shape[0], cols - a.shape[1]
    if pr == 0 and pc == 0:
        return a
    return jnp.pad(a, ((0, pr), (0, pc)))


def actor_kernel(x_ref, w1_ref, b1_ref, w2_ref, b2_ref, w3_ref, b3_ref, o_ref):
    a_out = o_ref.shape[-1]
    # bf16 cast of the streamed f32 state tile happens in-kernel (VPU slot,
    # hidden under the MXU) instead of as a separate wrapper XLA pass.
    x = x_ref[...].astype(jnp.bfloat16)
    # fc1 + relu  (bf16 MXU matmul, f32 accumulate / elementwise)
    h1 = jnp.dot(x, w1_ref[...], preferred_element_type=jnp.float32)
    h1 = jnp.maximum(h1 + b1_ref[...], 0.0).astype(jnp.bfloat16)
    # fc2 + relu
    h2 = jnp.dot(h1, w2_ref[...], preferred_element_type=jnp.float32)
    h2 = jnp.maximum(h2 + b2_ref[...], 0.0).astype(jnp.bfloat16)
    # fc3 + tanh (EUP). Only the real action columns are biased / tanh'ed /
    # stored: the out block's last dim equals the unpadded action dim.
    h3 = jnp.dot(h2, w3_ref[...], preferred_element_type=jnp.float32)
    o_ref[...] = jnp.tanh(h3[:, :a_out] + b3_ref[...]).astype(o_ref.dtype)


def _jnp_forward(state, params):
    h1 = jnp.maximum(state @ params["w1"] + params["b1"], 0.0)
    h2 = jnp.maximum(h1 @ params["w2"] + params["b2"], 0.0)
    return jnp.tanh(h2 @ params["w3"] + params["b3"])


def _vmem_bytes(TB, S_p, H_p, A_p, A, weight_bufs):
    """Rough per-kernel VMEM footprint estimate (bytes)."""
    x_io = 2 * TB * S_p * 4                                   # f32 state tile, 2-deep
    out_io = 2 * TB * A * 4                                   # f32 action tile, 2-deep
    w = weight_bufs * (S_p * H_p + H_p * H_p + H_p * A_p) * 2  # bf16 weights
    b = weight_bufs * (2 * H_p + A) * 4                        # f32 biases
    acts = TB * H_p * (4 + 2) * 2 + TB * A_p * 4               # h1/h2 (f32+bf16), h3
    return x_io + out_io + w + b + acts


def actor_forward(state, params, *, tile_b=2048, single_buffer_weights=False,
                  min_pallas_batch=0, vmem_budget_bytes=36 * _MIB,
                  out_dtype=jnp.float32):
    """state: [B, state_size] f32; params: dict of f32 weights/biases.

    Weights are stored [in_features, out_features] so the kernel computes
    x @ W + b (== PyTorch x @ W.T with W [out, in]).
    """
    w1, b1 = params["w1"], params["b1"]
    w2, b2 = params["w2"], params["b2"]
    w3, b3 = params["w3"], params["b3"]

    B, S = state.shape
    H = w1.shape[1]
    A = w3.shape[1]

    # Tiny-batch bypass (disabled by default so the demo runs the kernel).
    if B < min_pallas_batch:
        return _jnp_forward(state, params).astype(out_dtype)

    # Feature dims padded to 128 lanes (MXU K/N tiles, lane-dense layout).
    S_p = _round_up(S, 128)
    H_p = _round_up(H, 128)
    A_p = _round_up(A, 128)

    # Batch tile: large (avoids grid-step-overhead bound), multiple of 256,
    # and >= 2 grid steps when B > 256 so both v7x TensorCores get work.
    if B <= 256:
        TB = _round_up(max(B, 8), 8)
    else:
        tile_b = max(256, _round_up(tile_b, 256))
        TB = min(tile_b, _round_up(pl.cdiv(B, 2), 256))

    # Cap the tile by estimated VMEM footprint (v7x has only 64 MiB VMEM).
    weight_bufs = 1 if single_buffer_weights else 2
    while TB > 256 and _vmem_bytes(TB, S_p, H_p, A_p, A, weight_bufs) > vmem_budget_bytes:
        TB = max(256, ((TB // 2) // 256) * 256)

    B_p = _round_up(B, TB)

    # Pads are no-ops when already aligned; state stays f32 (bf16 cast happens
    # in-kernel), weights cast once to bf16, biases stay f32.
    x = _pad2(state, B_p, S_p)
    w1p = _pad2(w1, S_p, H_p).astype(jnp.bfloat16)
    w2p = _pad2(w2, H_p, H_p).astype(jnp.bfloat16)
    w3p = _pad2(w3, H_p, A_p).astype(jnp.bfloat16)
    b1p = _pad2(b1, 1, H_p)
    b2p = _pad2(b2, 1, H_p)
    b3p = b3  # unpadded: kernel only touches the real action columns

    grid = (B_p // TB,)

    def resident(a):
        # Weights/biases stay in VMEM across the whole batch grid.
        if single_buffer_weights:
            # Halves resident-weight VMEM — worthwhile once H >= ~2048 (v7x).
            # TODO(synk): for very large H, switch fc2 to a K-tiled grid axis.
            return pl.BlockSpec(a.shape, lambda i: (0, 0),
                                pipeline_mode=pl.Buffered(1))
        return pl.BlockSpec(a.shape, lambda i: (0, 0))

    footprint = _vmem_bytes(TB, S_p, H_p, A_p, A, weight_bufs)
    vmem_limit = int(min(max(footprint * 13 // 10, 32 * _MIB), 48 * _MIB))

    flops = 2 * B_p * (S_p * H_p + H_p * H_p + H_p * A_p)
    bytes_accessed = (
        x.size * 4
        + (w1p.size + w2p.size + w3p.size) * 2
        + (b1p.size + b2p.size + b3p.size) * 4
        + B_p * A * jnp.dtype(out_dtype).itemsize
    )

    out = pl.pallas_call(
        actor_kernel,
        out_shape=jax.ShapeDtypeStruct((B_p, A), out_dtype),
        grid=grid,
        in_specs=[
            pl.BlockSpec((TB, S_p), lambda i: (i, 0)),   # streamed state tile
            resident(w1p), resident(b1p),
            resident(w2p), resident(b2p),
            resident(w3p), resident(b3p),
        ],
        out_specs=pl.BlockSpec((TB, A), lambda i: (i, 0)),
        compiler_params=pltpu.CompilerParams(
            dimension_semantics=("parallel",),            # megacore sharding
            vmem_limit_bytes=vmem_limit,
        ),
        cost_estimate=pl.CostEstimate(
            flops=flops,
            transcendentals=B_p * A,
            bytes_accessed=bytes_accessed,
        ),
    )(x, w1p, b1p, w2p, b2p, w3p, b3p)

    return out if B_p == B else out[:B]


def init_actor_params(key, state_size, action_size, hidden_size=256):
    """Mimics PyTorch nn.Linear default init: U[-1/sqrt(fan_in), 1/sqrt(fan_in)]."""
    keys = jax.random.split(key, 6)

    def lin(kw, kb, fan_in, fan_out):
        bound = 1.0 / jnp.sqrt(jnp.float32(fan_in))
        w = jax.random.uniform(kw, (fan_in, fan_out), jnp.float32, -bound, bound)
        b = jax.random.uniform(kb, (1, fan_out), jnp.float32, -bound, bound)
        return w, b

    w1, b1 = lin(keys[0], keys[1], state_size, hidden_size)
    w2, b2 = lin(keys[2], keys[3], hidden_size, hidden_size)
    w3, b3 = lin(keys[4], keys[5], hidden_size, action_size)
    return {"w1": w1, "b1": b1, "w2": w2, "b2": b2, "w3": w3, "b3": b3}


def _ref_mixed(x, p):
    """Mixed-precision mirror of the kernel math (tight check)."""
    bf = jnp.bfloat16
    h1 = jnp.maximum(
        jnp.dot(x.astype(bf), p["w1"].astype(bf),
                preferred_element_type=jnp.float32) + p["b1"], 0.0)
    h2 = jnp.maximum(
        jnp.dot(h1.astype(bf), p["w2"].astype(bf),
                preferred_element_type=jnp.float32) + p["b2"], 0.0)
    h3 = jnp.dot(h2.astype(bf), p["w3"].astype(bf),
                 preferred_element_type=jnp.float32) + p["b3"]
    return jnp.tanh(h3)


if __name__ == "__main__":
    key = jax.random.PRNGKey(0)
    k_p1, k_s1, k_p2, k_s2 = jax.random.split(key, 4)

    # --- small demo config (module defaults, scaled down) -------------------
    batch, state_size, action_size, hidden_size = 2, 16, 8, 32
    params = init_actor_params(k_p1, state_size, action_size, hidden_size)
    state = jax.random.normal(k_s1, (batch, state_size), jnp.float32)

    action = jax.block_until_ready(actor_forward(state, params))
    assert action.shape == (batch, action_size)
    assert jnp.allclose(action, _ref_mixed(state, params), atol=3e-3, rtol=3e-3)
    assert jnp.allclose(action, _jnp_forward(state, params), atol=5e-2, rtol=5e-2)

    # --- larger, unaligned config: exercises batch padding + 2-step grid ----
    batch2, state2, action2, hidden2 = 777, 24, 4, 256
    params2 = init_actor_params(k_p2, state2, action2, hidden2)
    state_big = jax.random.normal(k_s2, (batch2, state2), jnp.float32)

    act_big = jax.block_until_ready(actor_forward(state_big, params2))
    assert act_big.shape == (batch2, action2)
    assert jnp.allclose(act_big, _ref_mixed(state_big, params2), atol=3e-3, rtol=3e-3)
    assert jnp.allclose(act_big, _jnp_forward(state_big, params2), atol=7e-2, rtol=7e-2)

    print("KERNEL_OK")
</pallas_src>

<mosaic_0001>
module attributes {stable_mosaic.version = 11 : i64} {
  func.func @actor_kernel(%arg0: i32, %arg1: memref<8x128xf32, #tpu.memory_space<vmem>>, %arg2: memref<128x128xbf16, #tpu.memory_space<vmem>>, %arg3: memref<1x128xf32, #tpu.memory_space<vmem>>, %arg4: memref<128x128xbf16, #tpu.memory_space<vmem>>, %arg5: memref<1x128xf32, #tpu.memory_space<vmem>>, %arg6: memref<128x128xbf16, #tpu.memory_space<vmem>>, %arg7: memref<1x8xf32, #tpu.memory_space<vmem>>, %arg8: memref<8x8xf32, #tpu.memory_space<vmem>>) attributes {dimension_semantics = [#tpu.dimension_semantics<parallel>], iteration_bounds = array<i64: 1>, scalar_prefetch = 0 : i64, scratch_operands = 0 : i64, tpu.core_type = #tpu.core_type<tc>, window_params = [{transform_indices = @transform_0, window_bounds = array<i64: 8, 128>}, {pipeline_mode = #tpu.pipeline_mode<synchronous>, transform_indices = @transform_1, window_bounds = array<i64: 128, 128>}, {pipeline_mode = #tpu.pipeline_mode<synchronous>, transform_indices = @transform_2, window_bounds = array<i64: 1, 128>}, {pipeline_mode = #tpu.pipeline_mode<synchronous>, transform_indices = @transform_3, window_bounds = array<i64: 128, 128>}, {pipeline_mode = #tpu.pipeline_mode<synchronous>, transform_indices = @transform_4, window_bounds = array<i64: 1, 128>}, {pipeline_mode = #tpu.pipeline_mode<synchronous>, transform_indices = @transform_5, window_bounds = array<i64: 128, 128>}, {pipeline_mode = #tpu.pipeline_mode<synchronous>, transform_indices = @transform_6, window_bounds = array<i64: 1, 8>}, {transform_indices = @transform_7, window_bounds = array<i64: 8, 8>}]} {
    %c0 = arith.constant 0 : index
    %c0_0 = arith.constant 0 : index
    %0 = vector.load %arg1[%c0, %c0_0] : memref<8x128xf32, #tpu.memory_space<vmem>>, vector<8x128xf32>
    %1 = arith.truncf %0 : vector<8x128xf32> to vector<8x128xbf16>
    %c0_1 = arith.constant 0 : index
    %c0_2 = arith.constant 0 : index
    %2 = vector.load %arg2[%c0_1, %c0_2] : memref<128x128xbf16, #tpu.memory_space<vmem>>, vector<128x128xbf16>
    %cst = arith.constant dense<0.000000e+00> : vector<8x128xf32>
    %3 = tpu.matmul %1, %2, %cst {dimension_numbers = #tpu.dot_dimension_numbers<[1], [0], [0], [1], [0, 0, 1, 1], [], []>} : vector<8x128xbf16>, vector<128x128xbf16>, vector<8x128xf32> -> vector<8x128xf32>
    %c0_3 = arith.constant 0 : index
    %c0_4 = arith.constant 0 : index
    %4 = vector.load %arg3[%c0_3, %c0_4] : memref<1x128xf32, #tpu.memory_space<vmem>>, vector<1x128xf32>
    %5 = vector.broadcast %4 : vector<1x128xf32> to vector<8x128xf32>
    %6 = arith.addf %3, %5 : vector<8x128xf32>
    %cst_5 = arith.constant 0.000000e+00 : f32
    %7 = vector.broadcast %cst_5 : f32 to vector<8x128xf32>
    %8 = arith.maximumf %6, %7 : vector<8x128xf32>
    %9 = arith.truncf %8 : vector<8x128xf32> to vector<8x128xbf16>
    %c0_6 = arith.constant 0 : index
    %c0_7 = arith.constant 0 : index
    %10 = vector.load %arg4[%c0_6, %c0_7] : memref<128x128xbf16, #tpu.memory_space<vmem>>, vector<128x128xbf16>
    %cst_8 = arith.constant dense<0.000000e+00> : vector<8x128xf32>
    %11 = tpu.matmul %9, %10, %cst_8 {dimension_numbers = #tpu.dot_dimension_numbers<[1], [0], [0], [1], [0, 0, 1, 1], [], []>} : vector<8x128xbf16>, vector<128x128xbf16>, vector<8x128xf32> -> vector<8x128xf32>
    %c0_9 = arith.constant 0 : index
    %c0_10 = arith.constant 0 : index
    %12 = vector.load %arg5[%c0_9, %c0_10] : memref<1x128xf32, #tpu.memory_space<vmem>>, vector<1x128xf32>
    %13 = vector.broadcast %12 : vector<1x128xf32> to vector<8x128xf32>
    %14 = arith.addf %11, %13 : vector<8x128xf32>
    %cst_11 = arith.constant 0.000000e+00 : f32
    %15 = vector.broadcast %cst_11 : f32 to vector<8x128xf32>
    %16 = arith.maximumf %14, %15 : vector<8x128xf32>
    %17 = arith.truncf %16 : vector<8x128xf32> to vector<8x128xbf16>
    %c0_12 = arith.constant 0 : index
    %c0_13 = arith.constant 0 : index
    %18 = vector.load %arg6[%c0_12, %c0_13] : memref<128x128xbf16, #tpu.memory_space<vmem>>, vector<128x128xbf16>
    %cst_14 = arith.constant dense<0.000000e+00> : vector<8x128xf32>
    %19 = tpu.matmul %17, %18, %cst_14 {dimension_numbers = #tpu.dot_dimension_numbers<[1], [0], [0], [1], [0, 0, 1, 1], [], []>} : vector<8x128xbf16>, vector<128x128xbf16>, vector<8x128xf32> -> vector<8x128xf32>
    %20 = vector.extract_strided_slice %19 {offsets = [0, 0], sizes = [8, 8], strides = [1, 1]} : vector<8x128xf32> to vector<8x8xf32>
    %c0_15 = arith.constant 0 : index
    %c0_16 = arith.constant 0 : index
    %21 = vector.load %arg7[%c0_15, %c0_16] : memref<1x8xf32, #tpu.memory_space<vmem>>, vector<1x8xf32>
    %22 = vector.broadcast %21 : vector<1x8xf32> to vector<8x8xf32>
    %23 = arith.addf %20, %22 : vector<8x8xf32>
    %24 = math.tanh %23 : vector<8x8xf32>
    %c0_17 = arith.constant 0 : index
    %c0_18 = arith.constant 0 : index
    %25 = vector.load %arg8[%c0_17, %c0_18] : memref<8x8xf32, #tpu.memory_space<vmem>>, vector<8x8xf32>
    tpu.vector_store %arg8[%c0_17, %c0_18], %24 {strides = array<i32>} : memref<8x8xf32, #tpu.memory_space<vmem>>, vector<8x8xf32>,
    return
  }
  func.func @transform_0(%arg0: i32) -> (i32, i32) {
    %c0_i32 = arith.constant 0 : i32
    %c0_i32_0 = arith.constant 0 : i32
    return %arg0, %c0_i32 : i32, i32
  }
  func.func @transform_1(%arg0: i32) -> (i32, i32) {
    %c0_i32 = arith.constant 0 : i32
    %c0_i32_0 = arith.constant 0 : i32
    %c0_i32_1 = arith.constant 0 : i32
    return %c0_i32, %c0_i32_0 : i32, i32
  }
  func.func @transform_2(%arg0: i32) -> (i32, i32) {
    %c0_i32 = arith.constant 0 : i32
    %c0_i32_0 = arith.constant 0 : i32
    %c0_i32_1 = arith.constant 0 : i32
    return %c0_i32, %c0_i32_0 : i32, i32
  }
  func.func @transform_3(%arg0: i32) -> (i32, i32) {
    %c0_i32 = arith.constant 0 : i32
    %c0_i32_0 = arith.constant 0 : i32
    %c0_i32_1 = arith.constant 0 : i32
    return %c0_i32, %c0_i32_0 : i32, i32
  }
  func.func @transform_4(%arg0: i32) -> (i32, i32) {
    %c0_i32 = arith.constant 0 : i32
    %c0_i32_0 = arith.constant 0 : i32
    %c0_i32_1 = arith.constant 0 : i32
    return %c0_i32, %c0_i32_0 : i32, i32
  }
  func.func @transform_5(%arg0: i32) -> (i32, i32) {
    %c0_i32 = arith.constant 0 : i32
    %c0_i32_0 = arith.constant 0 : i32
    %c0_i32_1 = arith.constant 0 : i32
    return %c0_i32, %c0_i32_0 : i32, i32
  }
  func.func @transform_6(%arg0: i32) -> (i32, i32) {
    %c0_i32 = arith.constant 0 : i32
    %c0_i32_0 = arith.constant 0 : i32
    %c0_i32_1 = arith.constant 0 : i32
    return %c0_i32, %c0_i32_0 : i32, i32
  }
  func.func @transform_7(%arg0: i32) -> (i32, i32) {
    %c0_i32 = arith.constant 0 : i32
    %c0_i32_0 = arith.constant 0 : i32
    return %arg0, %c0_i32 : i32, i32
  }
}

</mosaic_0001>

<llo_original>
// kernel: tpu_custom_call.1
$region0: #{tpu_custom_call.1}
  #allocation0 [shape = 'u32[]', space=smem, size = 0x4, offset = 0x4, fixed_abs, tag = 'smem constant byte address 0x4 - core index']
  #allocation1 [shape = 'u32[144,128]{1,0:T(1,128)}', space=vmem, size = 0x12000, scoped, tag = 'internal scratch']
  %s0 = inlined_call_operand.hbm [shape: f32[8,128], index: 0, kind: input, shape index: {}]
  %s1 = inlined_call_operand.hbm [shape: bf16[128,128], index: 1, kind: input, shape index: {}]
  %s2 = inlined_call_operand.vmem [shape: f32[1,128], index: 2, kind: input, shape index: {}]
  %s3 = inlined_call_operand.hbm [shape: bf16[128,128], index: 3, kind: input, shape index: {}]
  %s4 = inlined_call_operand.vmem [shape: f32[1,128], index: 4, kind: input, shape index: {}]
  %s5 = inlined_call_operand.hbm [shape: bf16[128,128], index: 5, kind: input, shape index: {}]
  %s6 = inlined_call_operand.vmem [shape: f32[1,8], index: 6, kind: input, shape index: {}]
  %s7 = inlined_call_operand.hbm [shape: f32[8,8], index: 7, kind: output, shape index: {}]
  %s8 = sld [smem:[#allocation0]]
  $region54: #{tpu_custom_call.1} parent=0
    _
  %s10 = ssub.s32 1, %s8
  %s11 = scalar_select 0, %s10, %s8
  $region1: #{tpu_custom_call.1} parent=0
    #allocation2 [shape = 'u8[4096]{0}', space=vmem, size = 0x1000, scoped, tag = 'input window, operand 0, single buffered']
    #allocation3 [shape = 's32[1]{0}', space=sflag, size = 0x4, scoped, tag = 'scoped memory for tpu_custom_call.1']
    #allocation4 [shape = 's32[1]{0}', space=sflag, size = 0x4, scoped, tag = 'scoped memory for tpu_custom_call.1']
    #allocation5 [shape = 'u8[32768]{0}', space=vmem, size = 0x8000, scoped, tag = 'input window, operand 1, single buffered']
    #allocation6 [shape = 's32[1]{0}', space=sflag, size = 0x4, scoped, tag = 'scoped memory for tpu_custom_call.1']
    #allocation7 [shape = 'u8[32768]{0}', space=vmem, size = 0x8000, scoped, tag = 'input window, operand 3, single buffered']
    #allocation8 [shape = 'u8[32768]{0}', space=vmem, size = 0x8000, scoped, tag = 'input window, operand 5, single buffered']
    #allocation9 [shape = 's32[1]{0}', space=sflag, size = 0x4, scoped, tag = 'scoped memory for tpu_custom_call.1']
    #allocation10 [shape = 'u8[4096]{0}', space=vmem, size = 0x1000, scoped, tag = 'output window, operand 0, single buffered']
    %12 = vsyncpa [#allocation3], 0
    %13 = vsyncpa [#allocation6], 0
    %14 = vsyncpa [#allocation9], 0
    %15 = vsyncpa [#allocation4], 0
    // Predicated region
    $region2: #{tpu_custom_call.1} parent=1 // pred_check
      _
    $region3: #{tpu_custom_call.1} parent=1 // pred_check_branch
      %17 = sbr.rel (0) target = $region5
    $region4: #{tpu_custom_call.1} parent=1 // pred_region
      %s19 = ssub.s32 128, 128
      %20 = vsyncadd [#allocation3], %s19
      %s22 = sshll.u32 [#allocation2], 4
      %s23 = int_to_ptr.vmem [resolvable:$true] %s22
      %25 = dma.hbm_to_vmem [thread:$0]  %s0, 128, %s23, [#allocation3]
    $region5: #{tpu_custom_call.1} parent=1 // pred_fallthru
      _
    // Predicated region
    $region6: #{tpu_custom_call.1} parent=1 // pred_check
      _
    $region7: #{tpu_custom_call.1} parent=1 // pred_check_branch
      %27 = sbr.rel (0) target = $region9
    $region8: #{tpu_custom_call.1} parent=1 // pred_region
      %s29 = ssub.s32 1024, 1024
      %30 = vsyncadd [#allocation6], %s29
      %s31 = sshll.u32 [#allocation5], 4
      %s32 = int_to_ptr.vmem [resolvable:$true] %s31
      %37 = dma.hbm_to_vmem [thread:$0]  %s1, 1024, %s32, [#allocation6], 64, 64, 4
    $region9: #{tpu_custom_call.1} parent=1 // pred_fallthru
      _
    // Predicated region
    $region10: #{tpu_custom_call.1} parent=1 // pred_check
      _
    $region11: #{tpu_custom_call.1} parent=1 // pred_check_branch
      %39 = sbr.rel (0) target = $region13
    $region12: #{tpu_custom_call.1} parent=1 // pred_region
      _
    $region13: #{tpu_custom_call.1} parent=1 // pred_fallthru
      _
    // Predicated region
    $region14: #{tpu_custom_call.1} parent=1 // pred_check
      _
    $region15: #{tpu_custom_call.1} parent=1 // pred_check_branch
      %41 = sbr.rel (0) target = $region17
    $region16: #{tpu_custom_call.1} parent=1 // pred_region
      %s43 = ssub.s32 1024, 1024
      %44 = vsyncadd [#allocation6], %s43
      %s45 = sshll.u32 [#allocation7], 4
      %s46 = int_to_ptr.vmem [resolvable:$true] %s45
      %51 = dma.hbm_to_vmem [thread:$0]  %s3, 1024, %s46, [#allocation6], 64, 64, 4
    $region17: #{tpu_custom_call.1} parent=1 // pred_fallthru
      _
    // Predicated region
    $region18: #{tpu_custom_call.1} parent=1 // pred_check
      _
    $region19: #{tpu_custom_call.1} parent=1 // pred_check_branch
      %53 = sbr.rel (0) target = $region21
    $region20: #{tpu_custom_call.1} parent=1 // pred_region
      _
    $region21: #{tpu_custom_call.1} parent=1 // pred_fallthru
      _
    // Predicated region
    $region22: #{tpu_custom_call.1} parent=1 // pred_check
      _
    $region23: #{tpu_custom_call.1} parent=1 // pred_check_branch
      %55 = sbr.rel (0) target = $region25
    $region24: #{tpu_custom_call.1} parent=1 // pred_region
      %s57 = ssub.s32 1024, 1024
      %58 = vsyncadd [#allocation9], %s57
      %s59 = sshll.u32 [#allocation8], 4
      %s60 = int_to_ptr.vmem [resolvable:$true] %s59
      %65 = dma.hbm_to_vmem [thread:$0]  %s5, 1024, %s60, [#allocation9], 64, 64, 4
    $region25: #{tpu_custom_call.1} parent=1 // pred_fallthru
      _
    // Predicated region
    $region26: #{tpu_custom_call.1} parent=1 // pred_check
      _
    $region27: #{tpu_custom_call.1} parent=1 // pred_check_branch
      %67 = sbr.rel (0) target = $region29
    $region28: #{tpu_custom_call.1} parent=1 // pred_region
      _
    $region29: #{tpu_custom_call.1} parent=1 // pred_fallthru
      _
    // Predicated region
    $region30: #{tpu_custom_call.1} parent=1 // pred_check
      _
    $region31: #{tpu_custom_call.1} parent=1 // pred_check_branch
      %69 = sbr.rel (0) target = $region33
    $region32: #{tpu_custom_call.1} parent=1 // pred_region
      %70 = dma.done [#allocation3], 128
    $region33: #{tpu_custom_call.1} parent=1 // pred_fallthru
      _
    // Predicated region
    $region34: #{tpu_custom_call.1} parent=1 // pred_check
      _
    $region35: #{tpu_custom_call.1} parent=1 // pred_check_branch
      %72 = sbr.rel (0) target = $region37
    $region36: #{tpu_custom_call.1} parent=1 // pred_region
      %73 = dma.done [#allocation6], 1024
    $region37: #{tpu_custom_call.1} parent=1 // pred_fallthru
      _
    // Predicated region
    $region38: #{tpu_custom_call.1} parent=1 // pred_check
      _
    $region39: #{tpu_custom_call.1} parent=1 // pred_check_branch
      %75 = sbr.rel (0) target = $region41
    $region40: #{tpu_custom_call.1} parent=1 // pred_region
      %76 = dma.done [#allocation6], 1024
    $region41: #{tpu_custom_call.1} parent=1 // pred_fallthru
      _
    // Predicated region
    $region42: #{tpu_custom_call.1} parent=1 // pred_check
      _
    $region43: #{tpu_custom_call.1} parent=1 // pred_check_branch
      %78 = sbr.rel (0) target = $region45
    $region44: #{tpu_custom_call.1} parent=1 // pred_region
      %79 = dma.done [#allocation9], 1024
    $region45: #{tpu_custom_call.1} parent=1 // pred_fallthru
      _
    %v81 = vld [vmem:[#allocation2] sm:$0xff]
    %v82 = vpack.c.bf16 %v81, %v81
    %v83 = vld [vmem:[#allocation5] sm:$0xf]
    %v84 = vld [vmem:[#allocation5 + $0x4] sm:$0xf]
    %v85 = vld [vmem:[#allocation5 + $0x8] sm:$0xf]
    %v86 = vld [vmem:[#allocation5 + $0xc] sm:$0xf]
    %v87 = vld [vmem:[#allocation5 + $0x10] sm:$0xf]
    %v88 = vld [vmem:[#allocation5 + $0x14] sm:$0xf]
    %v89 = vld [vmem:[#allocation5 + $0x18] sm:$0xf]
    %v90 = vld [vmem:[#allocation5 + $0x1c] sm:$0xf]
    %v91 = vld [vmem:[#allocation5 + $0x20] sm:$0xf]
    %v92 = vld [vmem:[#allocation5 + $0x24] sm:$0xf]
    %v93 = vld [vmem:[#allocation5 + $0x28] sm:$0xf]
    %v94 = vld [vmem:[#allocation5 + $0x2c] sm:$0xf]
    %v95 = vld [vmem:[#allocation5 + $0x30] sm:$0xf]
    %v96 = vld [vmem:[#allocation5 + $0x34] sm:$0xf]
    %v97 = vld [vmem:[#allocation5 + $0x38] sm:$0xf]
    %v98 = vld [vmem:[#allocation5 + $0x3c] sm:$0xf]
    %v99 = vld [vmem:[%s2] sm:$0x1]
    %v101 = vlaneseq
    %v102 = vshrl.u32 %v101, 7
    %v103 = vsub.s32 0, %v102
    %v104 = vrot.slane %v99, %v103
    %v122 = vunpack.c.l.b16 %v83
    %v123 = vunpack.c.l.b16 %v84
    %v124 = vunpack.c.l.b16 %v85
    %v125 = vunpack.c.l.b16 %v86
    %v126 = vunpack.c.l.b16 %v87
    %v127 = vunpack.c.l.b16 %v88
    %v128 = vunpack.c.l.b16 %v89
    %v129 = vunpack.c.l.b16 %v90
    %v130 = vunpack.c.l.b16 %v91
    %v131 = vunpack.c.l.b16 %v92
    %v132 = vunpack.c.l.b16 %v93
    %v133 = vunpack.c.l.b16 %v94
    %v134 = vunpack.c.l.b16 %v95
    %v135 = vunpack.c.l.b16 %v96
    %v136 = vunpack.c.l.b16 %v97
    %v137 = vunpack.c.l.b16 %v98
    %v138 = vpack.c.b16 %v123, %v122
    %v139 = vpack.c.b16 %v125, %v124
    %v140 = vpack.c.b16 %v127, %v126
    %v141 = vpack.c.b16 %v129, %v128
    %v142 = vpack.c.b16 %v131, %v130
    %v143 = vpack.c.b16 %v133, %v132
    %v144 = vpack.c.b16 %v135, %v134
    %v145 = vpack.c.b16 %v137, %v136
    %154 = vmatprep.subr.bf16.mxu0 0
    %155 = vmatpush1.bf16.msra.mxu0 %v145
    %156 = vmatprep.subr.bf16.mxu0 0
    %157 = vmatpush1.bf16.msra.mxu0 %v144
    %158 = vmatprep.subr.bf16.mxu0 0
    %159 = vmatpush1.bf16.msra.mxu0 %v143
    %160 = vmatprep.subr.bf16.mxu0 0
    %161 = vmatpush1.bf16.msra.mxu0 %v142
    %162 = vmatprep.subr.bf16.mxu0 0
    %163 = vmatpush1.bf16.msra.mxu0 %v141
    %164 = vmatprep.subr.bf16.mxu0 0
    %165 = vmatpush1.bf16.msra.mxu0 %v140
    %166 = vmatprep.subr.bf16.mxu0 0
    %167 = vmatpush1.bf16.msra.mxu0 %v139
    %168 = vmatprep.subr.bf16.mxu0 0
    %169 = vmatpush1.bf16.msra.mxu0 %v138
    %170 = vmatprep.subr.bf16.mxu0 0
    %171 = vmatpush2.bf16.msra.mxu0 0
    %172 = vmatprep.subr.bf16.mxu0 0
    %173 = vmatpush2.bf16.msra.mxu0 0
    %174 = vmatprep.subr.bf16.mxu0 0
    %175 = vmatpush2.bf16.msra.mxu0 0
    %176 = vmatprep.subr.bf16.mxu0 0
    %177 = vmatpush2.bf16.msra.mxu0 0
    %178 = vmatprep.subr.bf16.mxu0 0
    %179 = vmatpush2.bf16.msra.mxu0 0
    %180 = vmatprep.subr.bf16.mxu0 0
    %181 = vmatpush2.bf16.msra.mxu0 0
    %182 = vmatprep.subr.bf16.mxu0 0
    %183 = vmatpush2.bf16.msra.mxu0 0
    %184 = vmatprep.subr.bf16.mxu0 0
    %185 = vmatpush2.bf16.msra.mxu0 0
    %186 = vmatprep.mubr.bf16.mxu0 0
    %187 = vmatmul.mubr.bf16.gmra.mxu0 %v82
    %v188 = vpop.f32.mrf.mxu0
    %v189 = vadd.f32 %v104, %v188
    %v190 = vpop.f32.mrf.mxu0
    %v191 = vpop.f32.mrf.mxu0
    %v192 = vpop.f32.mrf.mxu0
    %193 = vdwg.mxu0
    %v194 = vmax.f32 %v189, 0.0
    %v195 = vpack.c.bf16 %v194, %v194
    %v196 = vld [vmem:[#allocation7] sm:$0xf]
    %v197 = vld [vmem:[#allocation7 + $0x4] sm:$0xf]
    %v198 = vld [vmem:[#allocation7 + $0x8] sm:$0xf]
    %v199 = vld [vmem:[#allocation7 + $0xc] sm:$0xf]
    %v200 = vld [vmem:[#allocation7 + $0x10] sm:$0xf]
    %v201 = vld [vmem:[#allocation7 + $0x14] sm:$0xf]
    %v202 = vld [vmem:[#allocation7 + $0x18] sm:$0xf]
    %v203 = vld [vmem:[#allocation7 + $0x1c] sm:$0xf]
    %v204 = vld [vmem:[#allocation7 + $0x20] sm:$0xf]
    %v205 = vld [vmem:[#allocation7 + $0x24] sm:$0xf]
    %v206 = vld [vmem:[#allocation7 + $0x28] sm:$0xf]
    %v207 = vld [vmem:[#allocation7 + $0x2c] sm:$0xf]
    %v208 = vld [vmem:[#allocation7 + $0x30] sm:$0xf]
    %v209 = vld [vmem:[#allocation7 + $0x34] sm:$0xf]
    %v210 = vld [vmem:[#allocation7 + $0x38] sm:$0xf]
    %v211 = vld [vmem:[#allocation7 + $0x3c] sm:$0xf]
    %v212 = vld [vmem:[%s4] sm:$0x1]
    %v214 = vlaneseq
    %v215 = vshrl.u32 %v214, 7
    %v216 = vsub.s32 0, %v215
    %v217 = vrot.slane %v212, %v216
    %v235 = vunpack.c.l.b16 %v196
    %v236 = vunpack.c.l.b16 %v197
    %v237 = vunpack.c.l.b16 %v198
    %v238 = vunpack.c.l.b16 %v199
    %v239 = vunpack.c.l.b16 %v200
    %v240 = vunpack.c.l.b16 %v201
    %v241 = vunpack.c.l.b16 %v202
    %v242 = vunpack.c.l.b16 %v203
    %v243 = vunpack.c.l.b16 %v204
    %v244 = vunpack.c.l.b16 %v205
    %v245 = vunpack.c.l.b16 %v206
    %v246 = vunpack.c.l.b16 %v207
    %v247 = vunpack.c.l.b16 %v208
    %v248 = vunpack.c.l.b16 %v209
    %v249 = vunpack.c.l.b16 %v210
    %v250 = vunpack.c.l.b16 %v211
    %v251 = vpack.c.b16 %v236, %v235
    %v252 = vpack.c.b16 %v238, %v237
    %v253 = vpack.c.b16 %v240, %v239
    %v254 = vpack.c.b16 %v242, %v241
    %v255 = vpack.c.b16 %v244, %v243
    %v256 = vpack.c.b16 %v246, %v245
    %v257 = vpack.c.b16 %v248, %v247
    %v258 = vpack.c.b16 %v250, %v249
    %267 = vmatprep.subr.bf16.mxu0 0
    %268 = vmatpush1.bf16.msra.mxu0 %v258
    %269 = vmatprep.subr.bf16.mxu0 0
    %270 = vmatpush1.bf16.msra.mxu0 %v257
    %271 = vmatprep.subr.bf16.mxu0 0
    %272 = vmatpush1.bf16.msra.mxu0 %v256
    %273 = vmatprep.subr.bf16.mxu0 0
    %274 = vmatpush1.bf16.msra.mxu0 %v255
    %275 = vmatprep.subr.bf16.mxu0 0
    %276 = vmatpush1.bf16.msra.mxu0 %v254
    %277 = vmatprep.subr.bf16.mxu0 0
    %278 = vmatpush1.bf16.msra.mxu0 %v253
    %279 = vmatprep.subr.bf16.mxu0 0
    %280 = vmatpush1.bf16.msra.mxu0 %v252
    %281 = vmatprep.subr.bf16.mxu0 0
    %282 = vmatpush1.bf16.msra.mxu0 %v251
    %283 = vmatprep.subr.bf16.mxu0 0
    %284 = vmatpush2.bf16.msra.mxu0 0
    %285 = vmatprep.subr.bf16.mxu0 0
    %286 = vmatpush2.bf16.msra.mxu0 0
    %287 = vmatprep.subr.bf16.mxu0 0
    %288 = vmatpush2.bf16.msra.mxu0 0
    %289 = vmatprep.subr.bf16.mxu0 0
    %290 = vmatpush2.bf16.msra.mxu0 0
    %291 = vmatprep.subr.bf16.mxu0 0
    %292 = vmatpush2.bf16.msra.mxu0 0
    %293 = vmatprep.subr.bf16.mxu0 0
    %294 = vmatpush2.bf16.msra.mxu0 0
    %295 = vmatprep.subr.bf16.mxu0 0
    %296 = vmatpush2.bf16.msra.mxu0 0
    %297 = vmatprep.subr.bf16.mxu0 0
    %298 = vmatpush2.bf16.msra.mxu0 0
    %299 = vmatprep.mubr.bf16.mxu0 0
    %300 = vmatmul.mubr.bf16.gmra.mxu0 %v195
    %v301 = vpop.f32.mrf.mxu0
    %v302 = vadd.f32 %v217, %v301
    %v303 = vpop.f32.mrf.mxu0
    %v304 = vpop.f32.mrf.mxu0
    %v305 = vpop.f32.mrf.mxu0
    %306 = vdwg.mxu0
    %v307 = vmax.f32 %v302, 0.0
    %v308 = vpack.c.bf16 %v307, %v307
    %v309 = vld [vmem:[#allocation8] sm:$0xf]
    %v310 = vld [vmem:[#allocation8 + $0x4] sm:$0xf]
    %v311 = vld [vmem:[#allocation8 + $0x8] sm:$0xf]
    %v312 = vld [vmem:[#allocation8 + $0xc] sm:$0xf]
    %v313 = vld [vmem:[#allocation8 + $0x10] sm:$0xf]
    %v314 = vld [vmem:[#allocation8 + $0x14] sm:$0xf]
    %v315 = vld [vmem:[#allocation8 + $0x18] sm:$0xf]
    %v316 = vld [vmem:[#allocation8 + $0x1c] sm:$0xf]
    %v317 = vld [vmem:[#allocation8 + $0x20] sm:$0xf]
    %v318 = vld [vmem:[#allocation8 + $0x24] sm:$0xf]
    %v319 = vld [vmem:[#allocation8 + $0x28] sm:$0xf]
    %v320 = vld [vmem:[#allocation8 + $0x2c] sm:$0xf]
    %v321 = vld [vmem:[#allocation8 + $0x30] sm:$0xf]
    %v322 = vld [vmem:[#allocation8 + $0x34] sm:$0xf]
    %v323 = vld [vmem:[#allocation8 + $0x38] sm:$0xf]
    %v324 = vld [vmem:[#allocation8 + $0x3c] sm:$0xf]
    %v341 = vunpack.c.l.b16 %v309
    %v342 = vunpack.c.l.b16 %v310
    %v343 = vunpack.c.l.b16 %v311
    %v344 = vunpack.c.l.b16 %v312
    %v345 = vunpack.c.l.b16 %v313
    %v346 = vunpack.c.l.b16 %v314
    %v347 = vunpack.c.l.b16 %v315
    %v348 = vunpack.c.l.b16 %v316
    %v349 = vunpack.c.l.b16 %v317
    %v350 = vunpack.c.l.b16 %v318
    %v351 = vunpack.c.l.b16 %v319
    %v352 = vunpack.c.l.b16 %v320
    %v353 = vunpack.c.l.b16 %v321
    %v354 = vunpack.c.l.b16 %v322
    %v355 = vunpack.c.l.b16 %v323
    %v356 = vunpack.c.l.b16 %v324
    %v357 = vpack.c.b16 %v342, %v341
    %v358 = vpack.c.b16 %v344, %v343
    %v359 = vpack.c.b16 %v346, %v345
    %v360 = vpack.c.b16 %v348, %v347
    %v361 = vpack.c.b16 %v350, %v349
    %v362 = vpack.c.b16 %v352, %v351
    %v363 = vpack.c.b16 %v354, %v353
    %v364 = vpack.c.b16 %v356, %v355
    %373 = vmatprep.subr.bf16.mxu0 0
    %374 = vmatpush1.bf16.msra.mxu0 %v364
    %375 = vmatprep.subr.bf16.mxu0 0
    %376 = vmatpush1.bf16.msra.mxu0 %v363
    %377 = vmatprep.subr.bf16.mxu0 0
    %378 = vmatpush1.bf16.msra.mxu0 %v362
    %379 = vmatprep.subr.bf16.mxu0 0
    %380 = vmatpush1.bf16.msra.mxu0 %v361
    %381 = vmatprep.subr.bf16.mxu0 0
    %382 = vmatpush1.bf16.msra.mxu0 %v360
    %383 = vmatprep.subr.bf16.mxu0 0
    %384 = vmatpush1.bf16.msra.mxu0 %v359
    %385 = vmatprep.subr.bf16.mxu0 0
    %386 = vmatpush1.bf16.msra.mxu0 %v358
    %387 = vmatprep.subr.bf16.mxu0 0
    %388 = vmatpush1.bf16.msra.mxu0 %v357
    %389 = vmatprep.subr.bf16.mxu0 0
    %390 = vmatpush2.bf16.msra.mxu0 0
    %391 = vmatprep.subr.bf16.mxu0 0
    %392 = vmatpush2.bf16.msra.mxu0 0
    %393 = vmatprep.subr.bf16.mxu0 0
    %394 = vmatpush2.bf16.msra.mxu0 0
    %395 = vmatprep.subr.bf16.mxu0 0
    %396 = vmatpush2.bf16.msra.mxu0 0
    %397 = vmatprep.subr.bf16.mxu0 0
    %398 = vmatpush2.bf16.msra.mxu0 0
    %399 = vmatprep.subr.bf16.mxu0 0
    %400 = vmatpush2.bf16.msra.mxu0 0
    %401 = vmatprep.subr.bf16.mxu0 0
    %402 = vmatpush2.bf16.msra.mxu0 0
    %403 = vmatprep.subr.bf16.mxu0 0
    %404 = vmatpush2.bf16.msra.mxu0 0
    %405 = vmatprep.mubr.bf16.mxu0 0
    %406 = vmatmul.mubr.bf16.gmra.mxu0 %v308
    %v407 = vpop.f32.mrf.mxu0
    %v408 = vadd.f32 0.0, %v407
    %v409 = vpop.f32.mrf.mxu0
    %v410 = vpop.f32.mrf.mxu0
    %v411 = vpop.f32.mrf.mxu0
    %412 = vdwg.mxu0
    %v413 = vld [vmem:[%s6] sm:$0x1]
    %v415 = vlaneseq
    %v416 = vshrl.u32 %v415, 7
    %v417 = vsub.s32 0, %v416
    %v418 = vrot.slane %v413, %v417
    %v420 = vadd.f32 %v408, %v418
    %v421 = vtanh.pop %v420
    %vm422 = vcmask 64512
    %423 = vst.msk [vmem:[#allocation10] sm:$0xff] %vm422, %v421
    // Predicated region
    $region46: #{tpu_custom_call.1} parent=1 // pred_check
      _
    $region47: #{tpu_custom_call.1} parent=1 // pred_check_branch
      %425 = sbr.rel (0) target = $region49
    $region48: #{tpu_custom_call.1} parent=1 // pred_region
      %s427 = ssub.s32 128, 128
      %428 = vsyncadd [#allocation4], %s427
      %s430 = sshll.u32 [#allocation10], 4
      %s431 = int_to_ptr.vmem [resolvable:$true] %s430
      %433 = dma.vmem_to_hbm [thread:$0]  %s431, 128, %s7, [#allocation4]
    $region49: #{tpu_custom_call.1} parent=1 // pred_fallthru
      _
    // Predicated region
    $region50: #{tpu_custom_call.1} parent=1 // pred_check
      _
    $region51: #{tpu_custom_call.1} parent=1 // pred_check_branch
      %435 = sbr.rel (0) target = $region53
    $region52: #{tpu_custom_call.1} parent=1 // pred_region
      %436 = dma.done [#allocation4], 128
    $region53: #{tpu_custom_call.1} parent=1 // pred_fallthru
      _
    %437 = vsyncpa [#allocation3], 1
    %438 = vsyncpa [#allocation6], 1
    %439 = vsyncpa [#allocation9], 1
    %440 = vsyncpa [#allocation4], 1

</llo_original>
